<compile_context>
chip_gen: v7x
topology: tpu7x:2x2x1
jax: 0.10.0
libtpu: 0.0.40
codegen_flags: <defaults>
</compile_context>

<pallas_src>
import jax
import jax.numpy as jnp
from jax.experimental import pallas as pl
from jax.experimental.pallas import tpu as pltpu


def _gather_matmul_kernel(flat_ref, x_ref, o_ref):
    """In-VMEM gather via one-hot matmul.

    flat_ref: VMEM (b_blk, 1, n) int32  -- flattened spatial indices
    x_ref:    VMEM (b_blk, c, hw)       -- per-batch feature slab (one big DMA)
    o_ref:    VMEM (b_blk, c, n)        -- gathered columns
    """
    b_blk, c, hw = x_ref.shape
    n = o_ref.shape[2]
    # onehot[b, p, j] = (p == flat[b, j]).  Out-of-range indices give an
    # all-zero column (matches the clamp-free safety of a matmul gather).
    ids = jax.lax.broadcasted_iota(jnp.int32, (b_blk, hw, n), 1)
    onehot = (ids == flat_ref[...]).astype(x_ref.dtype)       # (b_blk, hw, n)
    # Batched MXU matmul: (b,c,hw) x (b,hw,n) -> (b,c,n).  Multiplying by
    # exact 0/1 and accumulating in f32 reproduces the gather exactly.
    o_ref[...] = jnp.einsum(
        'bch,bhn->bcn', x_ref[...], onehot,
        preferred_element_type=jnp.float32).astype(o_ref.dtype)


def _pick_batch_block(b, per_block_bytes_per_batch, budget_bytes=16 << 20):
    """Largest divisor of b whose slab fits the VMEM budget while keeping
    >= 2 grid steps (when b >= 2) so both v7x TensorCores get work."""
    best = 1
    for cand in range(1, b + 1):
        if b % cand:
            continue
        if cand * per_block_bytes_per_batch > budget_bytes:
            continue
        if b >= 2 and b // cand < 2:
            continue
        best = cand
    return best


def mask_sampling(x, pts, *, num_classes=2, downsample=4):
    """JAX/Pallas equivalent of MaskSampling.forward.

    x:   (b, c, h, w) float features (NCHW)
    pts: (b, n, 2)    point coordinates in original-image pixels, (x, y) order
    returns: (b, c, ns, nc) with n = nc * ns, nc = num_classes
    """
    b, c, h, w = x.shape
    n = pts.shape[1]
    assert n % num_classes == 0
    ns = n // num_classes
    hw = h * w

    # Index arithmetic in plain JAX.  astype(int32) truncates toward zero,
    # matching torch's `.long()` cast for non-negative coordinates.
    pts_ds = (pts / downsample).astype(jnp.int32)
    flat = pts_ds[..., 0] + pts_ds[..., 1] * w                  # (b, n)
    # TODO(synk): torch.gather would raise on out-of-range points; we clamp.
    flat = jnp.clip(flat, 0, hw - 1).astype(jnp.int32)
    flat = flat.reshape(b, 1, n)                                # lane axis = n

    # Free reshape of the contiguous NCHW buffer — no HBM traffic.
    x_flat = x.reshape(b, c, hw)

    itemsize = jnp.dtype(x.dtype).itemsize
    # Rough per-batch VMEM footprint of one grid step (x slab double-buffered
    # by the pipeline + one-hot intermediate + output block + indices).
    per_batch_bytes = (2 * c * hw * itemsize      # x slab, double-buffered
                       + hw * n * itemsize        # one-hot intermediate
                       + 2 * c * n * itemsize     # output block, double-buffered
                       + n * 4)                   # indices
    b_blk = _pick_batch_block(b, per_batch_bytes)
    grid = (b // b_blk,)

    cost = pl.CostEstimate(
        flops=2 * b * c * hw * n,
        transcendentals=0,
        bytes_accessed=(b * c * hw + b * c * n) * itemsize + b * n * 4,
    )

    out = pl.pallas_call(
        _gather_matmul_kernel,
        out_shape=jax.ShapeDtypeStruct((b, c, n), x.dtype),
        grid_spec=pltpu.PrefetchScalarGridSpec(
            num_scalar_prefetch=0,
            grid=grid,
            in_specs=[
                pl.BlockSpec((b_blk, 1, n), lambda i: (i, 0, 0)),   # indices
                pl.BlockSpec((b_blk, c, hw), lambda i: (i, 0, 0)),  # features
            ],
            out_specs=pl.BlockSpec((b_blk, c, n), lambda i: (i, 0, 0)),
        ),
        compiler_params=pltpu.CompilerParams(
            dimension_semantics=("parallel",)),
        cost_estimate=cost,
    )(flat, x_flat)

    # (b, c, n)  ->  'b c (nc ns) -> b c ns nc'   (tiny output, cheap)
    out = out.reshape(b, c, num_classes, ns).transpose(0, 1, 3, 2)
    return out


if __name__ == "__main__":
    num_classes = 2
    downsample = 4
    b, c, h, w = 2, 8, 16, 16
    ns = 4
    n = num_classes * ns

    key = jax.random.PRNGKey(0)
    kx, kp = jax.random.split(key)
    x = jax.random.normal(kx, (b, c, h, w), dtype=jnp.float32)
    # point coords in original image space: [0, downsample*W)
    pts = jax.random.uniform(
        kp, (b, n, 2), minval=0.0, maxval=float(downsample * w) - 1e-3,
        dtype=jnp.float32)

    out = mask_sampling(x, pts, num_classes=num_classes, downsample=downsample)
    out = jax.block_until_ready(out)

    # pure-JAX reference (mirrors torch.gather semantics)
    pts_ds = (pts / downsample).astype(jnp.int32)
    flat = pts_ds[..., 0] + pts_ds[..., 1] * w                  # (b, n)
    x_flat = x.reshape(b, c, h * w)
    ref = jnp.take_along_axis(
        x_flat, jnp.broadcast_to(flat[:, None, :], (b, c, n)), axis=-1)
    ref = ref.reshape(b, c, num_classes, ns).transpose(0, 1, 3, 2)

    assert out.shape == (b, c, ns, num_classes)
    assert jnp.allclose(out, ref, atol=1e-5, rtol=1e-5)
    print("KERNEL_OK")
</pallas_src>

<mosaic_0001>
module attributes {stable_mosaic.version = 11 : i64} {
  func.func @_gather_matmul_kernel(%arg0: i32, %arg1: memref<1x1x8xi32, #tpu.memory_space<vmem>>, %arg2: memref<1x8x256xf32, #tpu.memory_space<vmem>>, %arg3: memref<1x8x8xf32, #tpu.memory_space<vmem>>) attributes {dimension_semantics = [#tpu.dimension_semantics<parallel>], iteration_bounds = array<i64: 2>, scalar_prefetch = 0 : i64, scratch_operands = 0 : i64, tpu.core_type = #tpu.core_type<tc>, window_params = [{transform_indices = @transform_0, window_bounds = array<i64: 1, 1, 8>}, {transform_indices = @transform_1, window_bounds = array<i64: 1, 8, 256>}, {transform_indices = @transform_2, window_bounds = array<i64: 1, 8, 8>}]} {
    %0 = tpu.iota {dimensions = array<i32: 1>} : vector<1x256x8xi32>
    %c0 = arith.constant 0 : index
    %c0_0 = arith.constant 0 : index
    %c0_1 = arith.constant 0 : index
    %1 = vector.load %arg1[%c0, %c0_0, %c0_1] : memref<1x1x8xi32, #tpu.memory_space<vmem>>, vector<1x1x8xi32>
    %2 = vector.broadcast %1 : vector<1x1x8xi32> to vector<1x256x8xi32>
    %3 = arith.cmpi eq, %0, %2 : vector<1x256x8xi32>
    %4 = arith.extui %3 : vector<1x256x8xi1> to vector<1x256x8xi32>
    %5 = arith.sitofp %4 : vector<1x256x8xi32> to vector<1x256x8xf32>
    %c0_2 = arith.constant 0 : index
    %c0_3 = arith.constant 0 : index
    %c0_4 = arith.constant 0 : index
    %6 = vector.load %arg2[%c0_2, %c0_3, %c0_4] : memref<1x8x256xf32, #tpu.memory_space<vmem>>, vector<1x8x256xf32>
    "tpu.trace_start"() <{level = 10 : i32, message = "bch,bhn->bcn"}> : () -> ()
    %cst = arith.constant dense<0.000000e+00> : vector<1x8x8xf32>
    %7 = tpu.matmul %6, %5, %cst {dimension_numbers = #tpu.dot_dimension_numbers<[2], [1], [1], [2], [0, 0, 0, 1, 1, 2], [0], [0]>} : vector<1x8x256xf32>, vector<1x256x8xf32>, vector<1x8x8xf32> -> vector<1x8x8xf32>
    "tpu.trace_stop"() : () -> ()
    %c0_5 = arith.constant 0 : index
    %c0_6 = arith.constant 0 : index
    %c0_7 = arith.constant 0 : index
    %8 = vector.load %arg3[%c0_5, %c0_6, %c0_7] : memref<1x8x8xf32, #tpu.memory_space<vmem>>, vector<1x8x8xf32>
    tpu.vector_store %arg3[%c0_5, %c0_6, %c0_7], %7 {strides = array<i32>} : memref<1x8x8xf32, #tpu.memory_space<vmem>>, vector<1x8x8xf32>,
    return
  }
  func.func @transform_0(%arg0: i32) -> (i32, i32, i32) {
    %c0_i32 = arith.constant 0 : i32
    %c0_i32_0 = arith.constant 0 : i32
    %c0_i32_1 = arith.constant 0 : i32
    return %arg0, %c0_i32, %c0_i32_0 : i32, i32, i32
  }
  func.func @transform_1(%arg0: i32) -> (i32, i32, i32) {
    %c0_i32 = arith.constant 0 : i32
    %c0_i32_0 = arith.constant 0 : i32
    %c0_i32_1 = arith.constant 0 : i32
    return %arg0, %c0_i32, %c0_i32_0 : i32, i32, i32
  }
  func.func @transform_2(%arg0: i32) -> (i32, i32, i32) {
    %c0_i32 = arith.constant 0 : i32
    %c0_i32_0 = arith.constant 0 : i32
    %c0_i32_1 = arith.constant 0 : i32
    return %arg0, %c0_i32, %c0_i32_0 : i32, i32, i32
  }
}

</mosaic_0001>

<llo_original>
// kernel: tpu_custom_call.1
$region0: #{tpu_custom_call.1}
  #allocation0 [shape = 'u32[]', space=smem, size = 0x4, offset = 0x4, fixed_abs, tag = 'smem constant byte address 0x4 - core index']
  #allocation1 [shape = 'u32[144,128]{1,0:T(1,128)}', space=vmem, size = 0x12000, scoped, tag = 'internal scratch']
  %s0 = inlined_call_operand.hbm [shape: s32[2,1,8], index: 0, kind: input, shape index: {}]
  %s1 = inlined_call_operand.hbm [shape: f32[2,8,256], index: 1, kind: input, shape index: {}]
  %s2 = inlined_call_operand.hbm [shape: f32[2,8,8], index: 2, kind: output, shape index: {}]
  %s3 = sld [smem:[#allocation0]]
  $region49: #{tpu_custom_call.1} parent=0
    _
  %s5 = ssub.s32 1, %s3
  %s6 = scalar_select 0, %s5, %s3
  $region1: #{tpu_custom_call.1} parent=0
    #allocation2 [shape = 'u8[1024]{0}', space=vmem, size = 0x400, scoped, tag = 'input window, operand 0']
    #allocation3 [shape = 's32[2]{0}', space=sflag, size = 0x8, scoped, tag = 'scoped memory for tpu_custom_call.1']
    #allocation4 [shape = 's32[2]{0}', space=sflag, size = 0x8, scoped, tag = 'scoped memory for tpu_custom_call.1']
    #allocation5 [shape = 'u8[16384]{0}', space=vmem, size = 0x4000, scoped, tag = 'input window, operand 1']
    #allocation6 [shape = 's32[2]{0}', space=sflag, size = 0x8, scoped, tag = 'scoped memory for tpu_custom_call.1']
    #allocation7 [shape = 'u8[8192]{0}', space=vmem, size = 0x2000, scoped, tag = 'output window, operand 0']
    %7 = vsyncpa [#allocation3], 0
    %s8 = scalar_lea.sflag [#allocation3], 1
    %9 = vsyncpa %s8, 0
    %10 = vsyncpa [#allocation6], 0
    %s11 = scalar_lea.sflag [#allocation6], 1
    %12 = vsyncpa %s11, 0
    %13 = vsyncpa [#allocation4], 0
    %s14 = scalar_lea.sflag [#allocation4], 1
    %15 = vsyncpa %s14, 0
    loop: start=0, step=1, limit=4
    $region2: #{tpu_custom_call.1} parent=1 // loop_pre_header
      _
    $region3: #{tpu_custom_call.1} parent=1 // loop_header
      %s17 = sphi 0, %s21
      %p18 = scmp.ge.s32.totalorder %s17, 4
      %s27 = sphi 0, %s29
      %s30 = sphi 0, %s27
      %s31 = sphi 0, %s30
      %s47 = sphi 0, %s31
      %s53 = sphi 0, %s55
      %s56 = sphi 0, %s53
      %s57 = sphi 0, %s56
      %s73 = sphi 0, %s57
      %s79 = sphi 0, %s81
      %s82 = sphi 0, %s79
      %s83 = sphi 0, %s82
      %s99 = sphi 0, %s83
    $region4: #{tpu_custom_call.1} parent=1 // loop_header_branch
      %20 = sbr.rel (%p18) target = $region8
    $region5: #{tpu_custom_call.1} parent=1 // loop_body
      %s22 = ssub.s32 %s17, 1
      %s23 = ssub.s32 %s17, 2
      %s24 = sadd.s32 %s17, 1
      %s25 = ssub.s32 %s17, %s24
      %p26 = scmp.eq.s32.totalorder %s25, 0
      %s28 = sadd.s32 %s27, 1
      %s29 = scalar_select %p26, %s27, %s28
      %p32 = pneg %p26
      %p33 = scmp.eq.s32.totalorder %s17, 1
      %p34 = por %p32, %p33
      %p35 = scmp.ne.s32.totalorder %s27, %s30
      %p36 = scmp.eq.s32.totalorder %s17, 0
      %p37 = por %p35, %p36
      %p38 = scmp.ne.s32.totalorder %s27, %s30
      %p39 = scmp.eq.s32.totalorder %s22, 1
      %p40 = por %p38, %p39
      %p41 = scmp.ne.s32.totalorder %s30, %s31
      %p42 = scmp.eq.s32.totalorder %s22, 0
      %p43 = por %p41, %p42
      %p44 = scmp.ne.s32.totalorder %s30, %s31
      %p45 = scmp.eq.s32.totalorder %s23, 1
      %p46 = por %p44, %p45
      %p48 = scmp.ne.s32.totalorder %s31, %s47
      %p49 = scmp.eq.s32.totalorder %s23, 0
      %p50 = por %p48, %p49
      %s51 = ssub.s32 %s17, %s24
      %p52 = scmp.eq.s32.totalorder %s51, 0
      %s54 = sadd.s32 %s53, 1
      %s55 = scalar_select %p52, %s53, %s54
      %p58 = pneg %p52
      %p59 = scmp.eq.s32.totalorder %s17, 1
      %p60 = por %p58, %p59
      %p61 = scmp.ne.s32.totalorder %s53, %s56
      %p62 = scmp.eq.s32.totalorder %s17, 0
      %p63 = por %p61, %p62
      %p64 = scmp.ne.s32.totalorder %s53, %s56
      %p65 = scmp.eq.s32.totalorder %s22, 1
      %p66 = por %p64, %p65
      %p67 = scmp.ne.s32.totalorder %s56, %s57
      %p68 = scmp.eq.s32.totalorder %s22, 0
      %p69 = por %p67, %p68
      %p70 = scmp.ne.s32.totalorder %s56, %s57
      %p71 = scmp.eq.s32.totalorder %s23, 1
      %p72 = por %p70, %p71
      %p74 = scmp.ne.s32.totalorder %s57, %s73
      %p75 = scmp.eq.s32.totalorder %s23, 0
      %p76 = por %p74, %p75
      %s77 = ssub.s32 %s17, %s24
      %p78 = scmp.eq.s32.totalorder %s77, 0
      %s80 = sadd.s32 %s79, 1
      %s81 = scalar_select %p78, %s79, %s80
      %p84 = pneg %p78
      %p85 = scmp.eq.s32.totalorder %s17, 1
      %p86 = por %p84, %p85
      %p87 = scmp.ne.s32.totalorder %s79, %s82
      %p88 = scmp.eq.s32.totalorder %s17, 0
      %p89 = por %p87, %p88
      %p90 = scmp.ne.s32.totalorder %s79, %s82
      %p91 = scmp.eq.s32.totalorder %s22, 1
      %p92 = por %p90, %p91
      %p93 = scmp.ne.s32.totalorder %s82, %s83
      %p94 = scmp.eq.s32.totalorder %s22, 0
      %p95 = por %p93, %p94
      %p96 = scmp.ne.s32.totalorder %s82, %s83
      %p97 = scmp.eq.s32.totalorder %s23, 1
      %p98 = por %p96, %p97
      %p100 = scmp.ne.s32.totalorder %s83, %s99
      %p101 = scmp.eq.s32.totalorder %s23, 0
      %p102 = por %p100, %p101
      %p103 = scmp.le.s32.totalorder 1, %s17
      %p104 = scmp.lt.s32.totalorder %s17, 3
      %p105 = pnand %p103, %p104
      %p106 = pneg %p105
      // Predicated region
      $region9: #{tpu_custom_call.1} parent=5 // pred_check
        _
      $region10: #{tpu_custom_call.1} parent=5 // pred_check_branch
        %108 = sbr.rel (%p105) target = $region12
      $region11: #{tpu_custom_call.1} parent=5 // pred_region
        %s109 = ssub.s32 %s17, 1
      $region12: #{tpu_custom_call.1} parent=5 // pred_fallthru
        _
      %p110 = scmp.lt.s32.totalorder %s17, 2
      // Predicated region
      $region13: #{tpu_custom_call.1} parent=5 // pred_check
        %p111 = pneg %p110
      $region14: #{tpu_custom_call.1} parent=5 // pred_check_branch
        %113 = sbr.rel (%p111) target = $region16
      $region15: #{tpu_custom_call.1} parent=5 // pred_region
        // Predicated region
        $region17: #{tpu_custom_call.1} parent=15 // pred_check
          %p114 = pneg %p37
        $region18: #{tpu_custom_call.1} parent=15 // pred_check_branch
          %116 = sbr.rel (%p114) target = $region20
        $region19: #{tpu_custom_call.1} parent=15 // pred_region
          %s117 = sand.u32 %s27, 1
          %s118 = scalar_lea.sflag [#allocation3], %s117
          %s119 = sand.u32 %s27, 1
          %s120 = scalar_lea.vmem [#allocation2], %s119
          %s122 = ssub.s32 16, 16
          %123 = vsyncadd %s118, %s122
          %s124 = smul.addr %s17, 16
          %s125 = scalar_lea.hbm %s0, %s124
          %s127 = sshll.u32 %s120, 4
          %s128 = int_to_ptr.vmem [resolvable:$true] %s127
          %130 = dma.hbm_to_vmem [thread:$0]  %s125, 16, %s128, %s118
        $region20: #{tpu_custom_call.1} parent=15 // pred_fallthru
          _
        // Predicated region
        $region21: #{tpu_custom_call.1} parent=15 // pred_check
          %p131 = pneg %p63
        $region22: #{tpu_custom_call.1} parent=15 // pred_check_branch
          %133 = sbr.rel (%p131) target = $region24
        $region23: #{tpu_custom_call.1} parent=15 // pred_region
          %s134 = sand.u32 %s53, 1
          %s135 = scalar_lea.sflag [#allocation6], %s134
          %s136 = sand.u32 %s53, 1
          %s137 = smul.addr %s136, 16
          %s138 = scalar_lea.vmem [#allocation5], %s137
          %s140 = ssub.s32 256, 256
          %141 = vsyncadd %s135, %s140
          %s142 = smul.addr %s17, 2
          %s143 = smul.addr %s142, 128
          %s144 = scalar_lea.hbm %s1, %s143
          %s146 = sshll.u32 %s138, 4
          %s147 = int_to_ptr.vmem [resolvable:$true] %s146
          %149 = dma.hbm_to_vmem [thread:$0]  %s144, 256, %s147, %s135
        $region24: #{tpu_custom_call.1} parent=15 // pred_fallthru
          _
      $region16: #{tpu_custom_call.1} parent=5 // pred_fallthru
        _
      %p150 = scmp.le.s32.totalorder 1, %s17
      %p151 = scmp.lt.s32.totalorder %s17, 3
      %p152 = pnand %p150, %p151
      %p153 = pneg %p152
      // Predicated region
      $region25: #{tpu_custom_call.1} parent=5 // pred_check
        _
      $region26: #{tpu_custom_call.1} parent=5 // pred_check_branch
        %155 = sbr.rel (%p152) target = $region28
      $region27: #{tpu_custom_call.1} parent=5 // pred_region
        %s156 = ssub.s32 %s17, 1
        %s157 = sand.u32 %s30, 1
        %s158 = scalar_lea.sflag [#allocation3], %s157
        %s159 = sand.u32 %s30, 1
        %s160 = scalar_lea.vmem [#allocation2], %s159
        // Predicated region
        $region29: #{tpu_custom_call.1} parent=27 // pred_check
          %p161 = pneg %p43
        $region30: #{tpu_custom_call.1} parent=27 // pred_check_branch
          %163 = sbr.rel (%p161) target = $region32
        $region31: #{tpu_custom_call.1} parent=27 // pred_region
          %164 = dma.done %s158, 16
        $region32: #{tpu_custom_call.1} parent=27 // pred_fallthru
          _
        %s165 = sand.u32 %s56, 1
        %s166 = scalar_lea.sflag [#allocation6], %s165
        %s167 = sand.u32 %s56, 1
        %s168 = smul.addr %s167, 16
        %s169 = scalar_lea.vmem [#allocation5], %s168
        // Predicated region
        $region33: #{tpu_custom_call.1} parent=27 // pred_check
          %p170 = pneg %p69
        $region34: #{tpu_custom_call.1} parent=27 // pred_check_branch
          %172 = sbr.rel (%p170) target = $region36
        $region35: #{tpu_custom_call.1} parent=27 // pred_region
          %173 = dma.done %s166, 256
        $region36: #{tpu_custom_call.1} parent=27 // pred_fallthru
          _
        %s174 = sand.u32 %s30, 1
        %s175 = scalar_lea.sflag [#allocation3], %s174
        %s176 = sand.u32 %s30, 1
        %s177 = scalar_lea.vmem [#allocation2], %s176
        %p178 = pneg %p43
        %p179 = pneg %p40
        %s180 = sand.u32 %s56, 1
        %s181 = scalar_lea.sflag [#allocation6], %s180
        %s182 = sand.u32 %s56, 1
        %s183 = smul.addr %s182, 16
        %s184 = scalar_lea.vmem [#allocation5], %s183
        %p185 = pneg %p69
        %p186 = pneg %p66
        %p187 = pneg %p95
        %p188 = pneg %p92
        %s189 = sand.u32 %s82, 1
        %s190 = scalar_lea.sflag [#allocation4], %s189
        %s191 = sand.u32 %s82, 1
        %s192 = smul.addr %s191, 8
        %s193 = scalar_lea.vmem [#allocation7], %s192
        %v194 = vlaneseq
        %v195 = vshrl.u32 %v194, 7
        %v196 = vadd.s32 %v195, 8
        %v197 = vadd.s32 %v195, 16
        %v198 = vadd.s32 %v195, 24
        %v199 = vadd.s32 %v195, 32
        %v200 = vadd.s32 %v195, 40
        %v201 = vadd.s32 %v195, 48
        %v202 = vadd.s32 %v195, 56
        %v203 = vadd.s32 %v195, 64
        %v204 = vadd.s32 %v195, 72
        %v205 = vadd.s32 %v195, 80
        %v206 = vadd.s32 %v195, 88
        %v207 = vadd.s32 %v195, 96
        %v208 = vadd.s32 %v195, 104
        %v209 = vadd.s32 %v195, 112
        %v210 = vadd.s32 %v195, 120
        %v211 = vadd.s32 %v195, 128
        %v212 = vadd.s32 %v195, 136
        %v213 = vadd.s32 %v195, 144
        %v214 = vadd.s32 %v195, 152
        %v215 = vadd.s32 %v195, 160
        %v216 = vadd.s32 %v195, 168
        %v217 = vadd.s32 %v195, 176
        %v218 = vadd.s32 %v195, 184
        %v219 = vadd.s32 %v195, 192
        %v220 = vadd.s32 %v195, 200
        %v221 = vadd.s32 %v195, 208
        %v222 = vadd.s32 %v195, 216
        %v223 = vadd.s32 %v195, 224
        %v224 = vadd.s32 %v195, 232
        %v225 = vadd.s32 %v195, 240
        %v226 = vadd.s32 %v195, 248
        %v227 = vld [vmem:[%s160] sm:$0x1]
        %v228 = vlaneseq
        %v229 = vshrl.u32 %v228, 7
        %v230 = vsub.s32 0, %v229
        %v231 = vrot.slane %v227, %v230
        %vm232 = vcmp.eq.s32.totalorder %v195, %v231
        %vm233 = vcmp.eq.s32.totalorder %v196, %v231
        %vm234 = vcmp.eq.s32.totalorder %v197, %v231
        %vm235 = vcmp.eq.s32.totalorder %v198, %v231
        %vm236 = vcmp.eq.s32.totalorder %v199, %v231
        %vm237 = vcmp.eq.s32.totalorder %v200, %v231
        %vm238 = vcmp.eq.s32.totalorder %v201, %v231
        %vm239 = vcmp.eq.s32.totalorder %v202, %v231
        %vm240 = vcmp.eq.s32.totalorder %v203, %v231
        %vm241 = vcmp.eq.s32.totalorder %v204, %v231
        %vm242 = vcmp.eq.s32.totalorder %v205, %v231
        %vm243 = vcmp.eq.s32.totalorder %v206, %v231
        %vm244 = vcmp.eq.s32.totalorder %v207, %v231
        %vm245 = vcmp.eq.s32.totalorder %v208, %v231
        %vm246 = vcmp.eq.s32.totalorder %v209, %v231
        %vm247 = vcmp.eq.s32.totalorder %v210, %v231
        %vm248 = vcmp.eq.s32.totalorder %v211, %v231
        %vm249 = vcmp.eq.s32.totalorder %v212, %v231
        %vm250 = vcmp.eq.s32.totalorder %v213, %v231
        %vm251 = vcmp.eq.s32.totalorder %v214, %v231
        %vm252 = vcmp.eq.s32.totalorder %v215, %v231
        %vm253 = vcmp.eq.s32.totalorder %v216, %v231
        %vm254 = vcmp.eq.s32.totalorder %v217, %v231
        %vm255 = vcmp.eq.s32.totalorder %v218, %v231
        %vm256 = vcmp.eq.s32.totalorder %v219, %v231
        %vm257 = vcmp.eq.s32.totalorder %v220, %v231
        %vm258 = vcmp.eq.s32.totalorder %v221, %v231
        %vm259 = vcmp.eq.s32.totalorder %v222, %v231
        %vm260 = vcmp.eq.s32.totalorder %v223, %v231
        %vm261 = vcmp.eq.s32.totalorder %v224, %v231
        %vm262 = vcmp.eq.s32.totalorder %v225, %v231
        %vm263 = vcmp.eq.s32.totalorder %v226, %v231
        %v264 = vsel %vm232, 1, 0
        %v265 = vsel %vm233, 1, 0
        %v266 = vsel %vm234, 1, 0
        %v267 = vsel %vm235, 1, 0
        %v268 = vsel %vm236, 1, 0
        %v269 = vsel %vm237, 1, 0
        %v270 = vsel %vm238, 1, 0
        %v271 = vsel %vm239, 1, 0
        %v272 = vsel %vm240, 1, 0
        %v273 = vsel %vm241, 1, 0
        %v274 = vsel %vm242, 1, 0
        %v275 = vsel %vm243, 1, 0
        %v276 = vsel %vm244, 1, 0
        %v277 = vsel %vm245, 1, 0
        %v278 = vsel %vm246, 1, 0
        %v279 = vsel %vm247, 1, 0
        %v280 = vsel %vm248, 1, 0
        %v281 = vsel %vm249, 1, 0
        %v282 = vsel %vm250, 1, 0
        %v283 = vsel %vm251, 1, 0
        %v284 = vsel %vm252, 1, 0
        %v285 = vsel %vm253, 1, 0
        %v286 = vsel %vm254, 1, 0
        %v287 = vsel %vm255, 1, 0
        %v288 = vsel %vm256, 1, 0
        %v289 = vsel %vm257, 1, 0
        %v290 = vsel %vm258, 1, 0
        %v291 = vsel %vm259, 1, 0
        %v292 = vsel %vm260, 1, 0
        %v293 = vsel %vm261, 1, 0
        %v294 = vsel %vm262, 1, 0
        %v295 = vsel %vm263, 1, 0
        %v296 = vcvt.s32.f32 %v264
        %v297 = vcvt.s32.f32 %v265
        %v298 = vcvt.s32.f32 %v266
        %v299 = vcvt.s32.f32 %v267
        %v300 = vcvt.s32.f32 %v268
        %v301 = vcvt.s32.f32 %v269
        %v302 = vcvt.s32.f32 %v270
        %v303 = vcvt.s32.f32 %v271
        %v304 = vcvt.s32.f32 %v272
        %v305 = vcvt.s32.f32 %v273
        %v306 = vcvt.s32.f32 %v274
        %v307 = vcvt.s32.f32 %v275
        %v308 = vcvt.s32.f32 %v276
        %v309 = vcvt.s32.f32 %v277
        %v310 = vcvt.s32.f32 %v278
        %v311 = vcvt.s32.f32 %v279
        %v312 = vcvt.s32.f32 %v280
        %v313 = vcvt.s32.f32 %v281
        %v314 = vcvt.s32.f32 %v282
        %v315 = vcvt.s32.f32 %v283
        %v316 = vcvt.s32.f32 %v284
        %v317 = vcvt.s32.f32 %v285
        %v318 = vcvt.s32.f32 %v286
        %v319 = vcvt.s32.f32 %v287
        %v320 = vcvt.s32.f32 %v288
        %v321 = vcvt.s32.f32 %v289
        %v322 = vcvt.s32.f32 %v290
        %v323 = vcvt.s32.f32 %v291
        %v324 = vcvt.s32.f32 %v292
        %v325 = vcvt.s32.f32 %v293
        %v326 = vcvt.s32.f32 %v294
        %v327 = vcvt.s32.f32 %v295
        %v328 = vld [vmem:[%s169] sm:$0xff]
        %v329 = vld [vmem:[%s169 + $0x8] sm:$0xff]
        %330 = vmatprep.subr.mxu0 0.0
        %331 = vmatpush1.msra.mxu0 %v296
        %332 = vmatprep.subr.mxu0 0.0
        %333 = vmatpush1.msra.mxu0 %v297
        %334 = vmatprep.subr.mxu0 0.0
        %335 = vmatpush1.msra.mxu0 %v298
        %336 = vmatprep.subr.mxu0 0.0
        %337 = vmatpush1.msra.mxu0 %v299
        %338 = vmatprep.subr.mxu0 0.0
        %339 = vmatpush1.msra.mxu0 %v300
        %340 = vmatprep.subr.mxu0 0.0
        %341 = vmatpush1.msra.mxu0 %v301
        %342 = vmatprep.subr.mxu0 0.0
        %343 = vmatpush1.msra.mxu0 %v302
        %344 = vmatprep.subr.mxu0 0.0
        %345 = vmatpush1.msra.mxu0 %v303
        %346 = vmatprep.subr.mxu0 0.0
        %347 = vmatpush1.msra.mxu0 %v304
        %348 = vmatprep.subr.mxu0 0.0
        %349 = vmatpush1.msra.mxu0 %v305
        %350 = vmatprep.subr.mxu0 0.0
        %351 = vmatpush1.msra.mxu0 %v306
        %352 = vmatprep.subr.mxu0 0.0
        %353 = vmatpush1.msra.mxu0 %v307
        %354 = vmatprep.subr.mxu0 0.0
        %355 = vmatpush1.msra.mxu0 %v308
        %356 = vmatprep.subr.mxu0 0.0
        %357 = vmatpush1.msra.mxu0 %v309
        %358 = vmatprep.subr.mxu0 0.0
        %359 = vmatpush1.msra.mxu0 %v310
        %360 = vmatprep.subr.mxu0 0.0
        %361 = vmatpush1.msra.mxu0 %v311
        %362 = vmatprep.subr.mxu0 0.0
        %363 = vmatpush1.msra.mxu0 %v312
        %364 = vmatprep.subr.mxu0 0.0
        %365 = vmatpush1.msra.mxu0 %v313
        %366 = vmatprep.subr.mxu0 0.0
        %367 = vmatpush1.msra.mxu0 %v314
        %368 = vmatprep.subr.mxu0 0.0
        %369 = vmatpush1.msra.mxu0 %v315
        %370 = vmatprep.subr.mxu0 0.0
        %371 = vmatpush1.msra.mxu0 %v316
        %372 = vmatprep.subr.mxu0 0.0
        %373 = vmatpush1.msra.mxu0 %v317
        %374 = vmatprep.subr.mxu0 0.0
        %375 = vmatpush1.msra.mxu0 %v318
        %376 = vmatprep.subr.mxu0 0.0
        %377 = vmatpush1.msra.mxu0 %v319
        %378 = vmatprep.subr.mxu0 0.0
        %379 = vmatpush1.msra.mxu0 %v320
        %380 = vmatprep.subr.mxu0 0.0
        %381 = vmatpush1.msra.mxu0 %v321
        %382 = vmatprep.subr.mxu0 0.0
        %383 = vmatpush1.msra.mxu0 %v322
        %384 = vmatprep.subr.mxu0 0.0
        %385 = vmatpush1.msra.mxu0 %v323
        %386 = vmatprep.subr.mxu0 0.0
        %387 = vmatpush1.msra.mxu0 %v324
        %388 = vmatprep.subr.mxu0 0.0
        %389 = vmatpush1.msra.mxu0 %v325
        %390 = vmatprep.subr.mxu0 0.0
        %391 = vmatpush1.msra.mxu0 %v326
        %392 = vmatprep.subr.mxu0 0.0
        %393 = vmatpush1.msra.mxu0 %v327
        %394 = vmatprep.mubr.f32.mxu0 %v329
        %395 = vmatmul.mubr.f32.gmra.mrb[0].mxu0 %v328
        %v396 = vpop.f32.mrb[0].mxu0
        %v397 = vadd.f32 0.0, %v396
        %v398 = vpop.f32.mrb[0].mxu0
        %399 = vdwg.mxu0
        %vm400 = vcmask 64512
        %401 = vst.msk [vmem:[%s193] sm:$0xff] %vm400, %v397
        %s402 = sand.u32 %s82, 1
        %s403 = scalar_lea.sflag [#allocation4], %s402
        %s404 = sand.u32 %s82, 1
        %s405 = smul.addr %s404, 8
        %s406 = scalar_lea.vmem [#allocation7], %s405
        // Predicated region
        $region37: #{tpu_custom_call.1} parent=27 // pred_check
          %p407 = pneg %p92
        $region38: #{tpu_custom_call.1} parent=27 // pred_check_branch
          %409 = sbr.rel (%p407) target = $region40
        $region39: #{tpu_custom_call.1} parent=27 // pred_region
          %s411 = ssub.s32 128, 128
          %412 = vsyncadd %s403, %s411
          %s413 = smul.addr %s22, 128
          %s414 = scalar_lea.hbm %s2, %s413
          %s416 = sshll.u32 %s406, 4
          %s417 = int_to_ptr.vmem [resolvable:$true] %s416
          %419 = dma.vmem_to_hbm [thread:$0]  %s417, 128, %s414, %s403
        $region40: #{tpu_custom_call.1} parent=27 // pred_fallthru
          _
      $region28: #{tpu_custom_call.1} parent=5 // pred_fallthru
        _
      %p420 = scmp.le.s32.totalorder 2, %s17
      // Predicated region
      $region41: #{tpu_custom_call.1} parent=5 // pred_check
        %p421 = pneg %p420
      $region42: #{tpu_custom_call.1} parent=5 // pred_check_branch
        %423 = sbr.rel (%p421) target = $region44
      $region43: #{tpu_custom_call.1} parent=5 // pred_region
        %s424 = ssub.s32 %s17, 2
        // Predicated region
        $region45: #{tpu_custom_call.1} parent=43 // pred_check
          %p425 = pneg %p98
        $region46: #{tpu_custom_call.1} parent=43 // pred_check_branch
          %427 = sbr.rel (%p425) target = $region48
        $region47: #{tpu_custom_call.1} parent=43 // pred_region
          %s428 = sand.u32 %s83, 1
          %s429 = scalar_lea.sflag [#allocation4], %s428
          %s430 = sand.u32 %s83, 1
          %s431 = smul.addr %s430, 8
          %s432 = scalar_lea.vmem [#allocation7], %s431
          %433 = dma.done %s429, 128
        $region48: #{tpu_custom_call.1} parent=43 // pred_fallthru
          _
      $region44: #{tpu_custom_call.1} parent=5 // pred_fallthru
        _
    $region6: #{tpu_custom_call.1} parent=1 // loop_footer
      %s21 = sadd.s32 1, %s17
    $region7: #{tpu_custom_call.1} parent=1 // loop_footer_branch
      %16 = sbr.rel target = $region3
    $region8: #{tpu_custom_call.1} parent=1 // loop_exit
      _
    %434 = vsyncpa [#allocation3], 1
    %s435 = scalar_lea.sflag [#allocation3], 1
    %436 = vsyncpa %s435, 1
    %437 = vsyncpa [#allocation6], 1
    %s438 = scalar_lea.sflag [#allocation6], 1
    %439 = vsyncpa %s438, 1
    %440 = vsyncpa [#allocation4], 1
    %s441 = scalar_lea.sflag [#allocation4], 1
    %442 = vsyncpa %s441, 1

</llo_original>
